<compile_context>
chip_gen: v5e
topology: v5e:2x2
jax: 0.10.0
libtpu: 0.0.40
codegen_flags: <defaults>
</compile_context>

<pallas_src>
import functools

import jax
import jax.numpy as jnp
from jax.experimental import pallas as pl

LANE = 128     # TPU vreg lane width
SUBLANE = 8    # TPU vreg sublane count (f32)


def _round_up(n, m):
    return -(-n // m) * m


# ---------------------------------------------------------------------------
# Fused kernel: x -> Linear -> ReLU -> ... -> Linear  (single pallas_call)
# ---------------------------------------------------------------------------
def _fused_mlp_kernel(x_ref, params_ref, o_ref, *, layer_meta):
    """x_ref: (M, K0) f32.
    params_ref: (R_total, 128) f32, per-layer block = [W^T (K_i rows) ; bias (1 row)],
                rows padded to a multiple of 8, lanes zero-padded to 128.
    o_ref: (M, 128) lane-dense output (real values in the first n_out columns).
    layer_meta: tuple of (row_offset, K_i, ncols_i); last layer has ncols = 128.
    """
    h = x_ref[...]                                             # (M, K0)
    # Hidden layers: Linear + ReLU.
    for row_off, k, n in layer_meta[:-1]:
        w = params_ref[row_off:row_off + k, :n]                # (K, N) static view
        b = params_ref[row_off + k:row_off + k + 1, :n]        # (1, N)
        h = jnp.maximum(
            jnp.dot(h, w, preferred_element_type=jnp.float32) + b, 0.0)
    # Final layer: Linear only, padded to the full 128-lane width -> unmasked store.
    row_off, k, n = layer_meta[-1]
    w = params_ref[row_off:row_off + k, :n]
    b = params_ref[row_off + k:row_off + k + 1, :n]
    o_ref[...] = (jnp.dot(h, w, preferred_element_type=jnp.float32) + b
                  ).astype(o_ref.dtype)


def _full_spec(shape):
    nd = len(shape)
    return pl.BlockSpec(shape, lambda *_: (0,) * nd)


def fused_mlp_forward(x, packed_params, *, layer_meta, n_out):
    """One fused Pallas kernel == PyTorchModel.forward."""
    M = x.shape[0]

    flops = 2 * M * sum(k * n for _, k, n in layer_meta)
    bytes_accessed = (x.size * x.dtype.itemsize
                      + packed_params.size * packed_params.dtype.itemsize
                      + M * LANE * jnp.dtype(x.dtype).itemsize)
    cost = pl.CostEstimate(flops=flops, transcendentals=0,
                           bytes_accessed=bytes_accessed)

    out_padded = pl.pallas_call(
        functools.partial(_fused_mlp_kernel, layer_meta=layer_meta),
        out_shape=jax.ShapeDtypeStruct((M, LANE), x.dtype),
        in_specs=[_full_spec(x.shape), _full_spec(packed_params.shape)],
        out_specs=_full_spec((M, LANE)),
        cost_estimate=cost,
    )(x, packed_params)
    return out_padded[:, :n_out]


# ---------------------------------------------------------------------------
# Parameters (nn.Linear convention) + one-time offline packing
# ---------------------------------------------------------------------------
def init_mlp_params(features, key):
    """Deterministic init matching nn.Linear shapes: W (out, in), b (out,)."""
    params = []
    for i in range(len(features) - 1):
        fan_in, fan_out = features[i], features[i + 1]
        key, kw, kb = jax.random.split(key, 3)
        bound = 1.0 / jnp.sqrt(fan_in)
        w = jax.random.uniform(kw, (fan_out, fan_in), jnp.float32, -bound, bound)
        b = jax.random.uniform(kb, (fan_out,), jnp.float32, -bound, bound)
        params.append((w, b))
    return params


def pack_params(params):
    """One-time hoist: pack every (W, b) into a single (R_total, 128) f32 buffer.

    Per layer block layout (rows padded to a multiple of 8 sublanes):
        rows [0, K)   : W^T  (K = in_features), columns [0, N) real, rest zero
        row  K        : bias, columns [0, N) real, rest zero
    The LAST layer keeps its full 128-lane zero padding live in the kernel so
    the output store is lane-dense.
    Returns (packed_array, layer_meta) with layer_meta = ((row_off, K, ncols), ...).
    """
    blocks, meta = [], []
    row_off = 0
    num_layers = len(params)
    for i, (w, b) in enumerate(params):
        w = jnp.asarray(w, jnp.float32)
        b = jnp.asarray(b, jnp.float32)
        n_out, n_in = w.shape
        rows = _round_up(n_in + 1, SUBLANE)
        blk = jnp.zeros((rows, LANE), jnp.float32)
        blk = blk.at[:n_in, :n_out].set(w.T)
        blk = blk.at[n_in, :n_out].set(b)
        blocks.append(blk)
        ncols = LANE if i == num_layers - 1 else n_out
        meta.append((row_off, n_in, ncols))
        row_off += rows
    return jnp.concatenate(blocks, axis=0), tuple(meta)


def reference_forward(x, params):
    n = len(params)
    for i, (w, b) in enumerate(params):
        x = x @ w.T + b
        if i < n - 1:
            x = jnp.maximum(x, 0.0)
    return x


if __name__ == "__main__":
    features = [32, 64, 64, 16]          # `features` arg of PyTorchModel
    batch = 8

    key = jax.random.PRNGKey(0)
    key, kx = jax.random.split(key)
    x = jax.random.normal(kx, (batch, features[0]), jnp.float32)
    params = init_mlp_params(features, key)

    packed, layer_meta = pack_params(params)       # one-time; not per call

    fwd = jax.jit(functools.partial(fused_mlp_forward,
                                    layer_meta=layer_meta,
                                    n_out=features[-1]))
    out = jax.block_until_ready(fwd(x, packed))

    ref = reference_forward(x, params)
    assert out.shape == (batch, features[-1])
    assert jnp.allclose(out, ref, atol=1e-5, rtol=1e-5)

    print("KERNEL_OK")
</pallas_src>

<mosaic_0001>
module attributes {stable_mosaic.version = 11 : i64} {
  func.func @_fused_mlp_kernel(%arg0: memref<8x32xf32, #tpu.memory_space<vmem>>, %arg1: memref<184x128xf32, #tpu.memory_space<vmem>>, %arg2: memref<8x128xf32, #tpu.memory_space<vmem>>) attributes {dimension_semantics = [], scalar_prefetch = 0 : i64, scratch_operands = 0 : i64, tpu.core_type = #tpu.core_type<tc>} {
    %c0 = arith.constant 0 : index
    %c0_0 = arith.constant 0 : index
    %0 = vector.load %arg0[%c0, %c0_0] : memref<8x32xf32, #tpu.memory_space<vmem>>, vector<8x32xf32>
    %c0_1 = arith.constant 0 : index
    %c0_2 = arith.constant 0 : index
    %1 = vector.load %arg1[%c0_1, %c0_2] : memref<184x128xf32, #tpu.memory_space<vmem>>, vector<32x64xf32>
    %c32 = arith.constant 32 : index
    %c0_3 = arith.constant 0 : index
    %2 = vector.load %arg1[%c32, %c0_3] : memref<184x128xf32, #tpu.memory_space<vmem>>, vector<1x64xf32>
    %cst = arith.constant dense<0.000000e+00> : vector<8x64xf32>
    %3 = tpu.matmul %0, %1, %cst {dimension_numbers = #tpu.dot_dimension_numbers<[1], [0], [0], [1], [0, 0, 1, 1], [], []>} : vector<8x32xf32>, vector<32x64xf32>, vector<8x64xf32> -> vector<8x64xf32>
    %4 = vector.broadcast %2 : vector<1x64xf32> to vector<8x64xf32>
    %5 = arith.addf %3, %4 : vector<8x64xf32>
    %cst_4 = arith.constant 0.000000e+00 : f32
    %6 = vector.broadcast %cst_4 : f32 to vector<8x64xf32>
    %7 = arith.maximumf %5, %6 : vector<8x64xf32>
    %c40 = arith.constant 40 : index
    %c0_5 = arith.constant 0 : index
    %8 = vector.load %arg1[%c40, %c0_5] : memref<184x128xf32, #tpu.memory_space<vmem>>, vector<64x64xf32>
    %c104 = arith.constant 104 : index
    %c0_6 = arith.constant 0 : index
    %9 = vector.load %arg1[%c104, %c0_6] : memref<184x128xf32, #tpu.memory_space<vmem>>, vector<1x64xf32>
    %cst_7 = arith.constant dense<0.000000e+00> : vector<8x64xf32>
    %10 = tpu.matmul %7, %8, %cst_7 {dimension_numbers = #tpu.dot_dimension_numbers<[1], [0], [0], [1], [0, 0, 1, 1], [], []>} : vector<8x64xf32>, vector<64x64xf32>, vector<8x64xf32> -> vector<8x64xf32>
    %11 = vector.broadcast %9 : vector<1x64xf32> to vector<8x64xf32>
    %12 = arith.addf %10, %11 : vector<8x64xf32>
    %cst_8 = arith.constant 0.000000e+00 : f32
    %13 = vector.broadcast %cst_8 : f32 to vector<8x64xf32>
    %14 = arith.maximumf %12, %13 : vector<8x64xf32>
    %c112 = arith.constant 112 : index
    %c0_9 = arith.constant 0 : index
    %15 = vector.load %arg1[%c112, %c0_9] : memref<184x128xf32, #tpu.memory_space<vmem>>, vector<64x128xf32>
    %c176 = arith.constant 176 : index
    %c0_10 = arith.constant 0 : index
    %16 = vector.load %arg1[%c176, %c0_10] : memref<184x128xf32, #tpu.memory_space<vmem>>, vector<1x128xf32>
    %cst_11 = arith.constant dense<0.000000e+00> : vector<8x128xf32>
    %17 = tpu.matmul %14, %15, %cst_11 {dimension_numbers = #tpu.dot_dimension_numbers<[1], [0], [0], [1], [0, 0, 1, 1], [], []>} : vector<8x64xf32>, vector<64x128xf32>, vector<8x128xf32> -> vector<8x128xf32>
    %18 = vector.broadcast %16 : vector<1x128xf32> to vector<8x128xf32>
    %19 = arith.addf %17, %18 : vector<8x128xf32>
    %c0_12 = arith.constant 0 : index
    %c0_13 = arith.constant 0 : index
    %20 = vector.load %arg2[%c0_12, %c0_13] : memref<8x128xf32, #tpu.memory_space<vmem>>, vector<8x128xf32>
    tpu.vector_store %arg2[%c0_12, %c0_13], %19 {strides = array<i32>} : memref<8x128xf32, #tpu.memory_space<vmem>>, vector<8x128xf32>,
    return
  }
}

</mosaic_0001>

<llo_original>
// kernel: fused_mlp_forward.1
$region0: #{fused_mlp_forward.1}
  #allocation0 [shape = 'u32[]', space=smem, size = 0x4, offset = 0x4, fixed_abs, tag = 'smem constant byte address 0x4 - core index']
  #allocation1 [shape = 'u32[72,128]{1,0:T(1,128)}', space=vmem, size = 0x9000, scoped, tag = 'internal scratch']
  %s0 = inlined_call_operand.hbm [shape: f32[8,32], index: 0, kind: input, shape index: {}]
  %s1 = inlined_call_operand.hbm [shape: f32[184,128], index: 1, kind: input, shape index: {}]
  %s2 = inlined_call_operand.hbm [shape: f32[8,128], index: 2, kind: output, shape index: {}]
  %s3 = sld [smem:[#allocation0]]
  $region26: #{fused_mlp_forward.1} parent=0
    _
  %s5 = ssub.s32 1, %s3
  %s6 = scalar_select 0, %s5, %s3
  $region1: #{fused_mlp_forward.1} parent=0
    #allocation2 [shape = 'u8[4096]{0}', space=vmem, size = 0x1000, scoped, tag = 'input window, operand 0, single buffered']
    #allocation3 [shape = 's32[1]{0}', space=sflag, size = 0x4, scoped, tag = 'scoped memory for fused_mlp_forward.1']
    #allocation4 [shape = 's32[1]{0}', space=sflag, size = 0x4, scoped, tag = 'scoped memory for fused_mlp_forward.1']
    #allocation5 [shape = 'u8[94208]{0}', space=vmem, size = 0x17000, scoped, tag = 'input window, operand 1, single buffered']
    #allocation6 [shape = 's32[1]{0}', space=sflag, size = 0x4, scoped, tag = 'scoped memory for fused_mlp_forward.1']
    #allocation7 [shape = 'u8[4096]{0}', space=vmem, size = 0x1000, scoped, tag = 'output window, operand 0, single buffered']
    %7 = vsyncpa [#allocation3], 0
    %8 = vsyncpa [#allocation6], 0
    %9 = vsyncpa [#allocation4], 0
    // Predicated region
    $region2: #{fused_mlp_forward.1} parent=1 // pred_check
      _
    $region3: #{fused_mlp_forward.1} parent=1 // pred_check_branch
      %11 = sbr.rel (0) target = $region5
    $region4: #{fused_mlp_forward.1} parent=1 // pred_region
      %13 = vsyncadd [#allocation3], 0
      %s15 = sshll.u32 %s0, 4
      %s16 = int_to_ptr.hbm [resolvable:$true] %s15
      %s17 = sshll.u32 [#allocation2], 4
      %s18 = int_to_ptr.vmem [resolvable:$true] %s17
      %20 = dma.hbm_to_vmem [thread:$0]  %s16, 128, %s18, [#allocation3]
    $region5: #{fused_mlp_forward.1} parent=1 // pred_fallthru
      _
    // Predicated region
    $region6: #{fused_mlp_forward.1} parent=1 // pred_check
      _
    $region7: #{fused_mlp_forward.1} parent=1 // pred_check_branch
      %22 = sbr.rel (0) target = $region9
    $region8: #{fused_mlp_forward.1} parent=1 // pred_region
      %24 = vsyncadd [#allocation6], 0
      %s25 = sshll.u32 %s1, 4
      %s26 = int_to_ptr.hbm [resolvable:$true] %s25
      %s27 = sshll.u32 [#allocation5], 4
      %s28 = int_to_ptr.vmem [resolvable:$true] %s27
      %33 = dma.hbm_to_vmem [thread:$0]  %s26, 2944, %s28, [#allocation6], 128, 128, 8
    $region9: #{fused_mlp_forward.1} parent=1 // pred_fallthru
      _
    // Predicated region
    $region10: #{fused_mlp_forward.1} parent=1 // pred_check
      _
    $region11: #{fused_mlp_forward.1} parent=1 // pred_check_branch
      %35 = sbr.rel (0) target = $region13
    $region12: #{fused_mlp_forward.1} parent=1 // pred_region
      %37 = dma.done [#allocation3], 128
    $region13: #{fused_mlp_forward.1} parent=1 // pred_fallthru
      _
    // Predicated region
    $region14: #{fused_mlp_forward.1} parent=1 // pred_check
      _
    $region15: #{fused_mlp_forward.1} parent=1 // pred_check_branch
      %39 = sbr.rel (0) target = $region17
    $region16: #{fused_mlp_forward.1} parent=1 // pred_region
      %41 = dma.done [#allocation6], 2944
    $region17: #{fused_mlp_forward.1} parent=1 // pred_fallthru
      _
    %v42 = vld [vmem:[#allocation2] sm:$0xff]
    %v43 = vld [vmem:[#allocation5] sm:$0xff]
    %v44 = vld [vmem:[#allocation5 + $0x8] sm:$0xff]
    %v45 = vld [vmem:[#allocation5 + $0x10] sm:$0xff]
    %v46 = vld [vmem:[#allocation5 + $0x18] sm:$0xff]
    %v47 = vld [vmem:[#allocation5 + $0x20] sm:$0x1]
    %v48 = vperm.slane %v47, 0
    %vm49 = vcmask 261120
    %v51 = vsel %vm49, %v42, 0
    %53 = vmatpush.msra.mxu0 0.0
    %54 = vmatpush.msra.mxu0 0.0
    %55 = vmatpush.msra.mxu0 0.0
    %56 = vmatpush.msra.mxu0 0.0
    %57 = vmatpush.msra.mxu0 0.0
    %58 = vmatpush.msra.mxu0 0.0
    %59 = vmatpush.msra.mxu0 0.0
    %60 = vmatpush.msra.mxu0 0.0
    %61 = vmatpush.msra.mxu0 0.0
    %62 = vmatpush.msra.mxu0 0.0
    %63 = vmatpush.msra.mxu0 0.0
    %64 = vmatpush.msra.mxu0 0.0
    %65 = vmatpush.msra.mxu0 %v46
    %66 = vmatpush.msra.mxu0 %v45
    %67 = vmatpush.msra.mxu0 %v44
    %68 = vmatpush.msra.mxu0 %v43
    %69 = vmatmul.f32.gmra.mxu0 %v51
    %v70 = vpop.f32.mrf.mxu0
    %v71 = vadd.f32 %v48, %v70
    %72 = vdwg.mxu0
    %v73 = vmax.f32 %v71, 0.0
    %v74 = vld [vmem:[#allocation5 + $0x28] sm:$0xff]
    %v75 = vld [vmem:[#allocation5 + $0x30] sm:$0xff]
    %v76 = vld [vmem:[#allocation5 + $0x38] sm:$0xff]
    %v77 = vld [vmem:[#allocation5 + $0x40] sm:$0xff]
    %v78 = vld [vmem:[#allocation5 + $0x48] sm:$0xff]
    %v79 = vld [vmem:[#allocation5 + $0x50] sm:$0xff]
    %v80 = vld [vmem:[#allocation5 + $0x58] sm:$0xff]
    %v81 = vld [vmem:[#allocation5 + $0x60] sm:$0xff]
    %v82 = vld [vmem:[#allocation5 + $0x68] sm:$0x1]
    %v83 = vperm.slane %v82, 0
    %vm84 = vcmask 523264
    %v86 = vsel %vm84, %v73, 0
    %88 = vmatpush.msra.mxu0 0.0
    %89 = vmatpush.msra.mxu0 0.0
    %90 = vmatpush.msra.mxu0 0.0
    %91 = vmatpush.msra.mxu0 0.0
    %92 = vmatpush.msra.mxu0 0.0
    %93 = vmatpush.msra.mxu0 0.0
    %94 = vmatpush.msra.mxu0 0.0
    %95 = vmatpush.msra.mxu0 0.0
    %96 = vmatpush.msra.mxu0 %v81
    %97 = vmatpush.msra.mxu0 %v80
    %98 = vmatpush.msra.mxu0 %v79
    %99 = vmatpush.msra.mxu0 %v78
    %100 = vmatpush.msra.mxu0 %v77
    %101 = vmatpush.msra.mxu0 %v76
    %102 = vmatpush.msra.mxu0 %v75
    %103 = vmatpush.msra.mxu0 %v74
    %104 = vmatmul.f32.gmra.mxu0 %v86
    %v105 = vpop.f32.mrf.mxu0
    %v106 = vadd.f32 %v83, %v105
    %107 = vdwg.mxu0
    %v108 = vmax.f32 %v106, 0.0
    %v109 = vld [vmem:[#allocation5 + $0x70] sm:$0xff]
    %v110 = vld [vmem:[#allocation5 + $0x78] sm:$0xff]
    %v111 = vld [vmem:[#allocation5 + $0x80] sm:$0xff]
    %v112 = vld [vmem:[#allocation5 + $0x88] sm:$0xff]
    %v113 = vld [vmem:[#allocation5 + $0x90] sm:$0xff]
    %v114 = vld [vmem:[#allocation5 + $0x98] sm:$0xff]
    %v115 = vld [vmem:[#allocation5 + $0xa0] sm:$0xff]
    %v116 = vld [vmem:[#allocation5 + $0xa8] sm:$0xff]
    %v117 = vld [vmem:[#allocation5 + $0xb0] sm:$0x1]
    %v118 = vperm.slane %v117, 0
    %v120 = vsel %vm84, %v108, 0
    %122 = vmatpush.msra.mxu0 0.0
    %123 = vmatpush.msra.mxu0 0.0
    %124 = vmatpush.msra.mxu0 0.0
    %125 = vmatpush.msra.mxu0 0.0
    %126 = vmatpush.msra.mxu0 0.0
    %127 = vmatpush.msra.mxu0 0.0
    %128 = vmatpush.msra.mxu0 0.0
    %129 = vmatpush.msra.mxu0 0.0
    %130 = vmatpush.msra.mxu0 %v116
    %131 = vmatpush.msra.mxu0 %v115
    %132 = vmatpush.msra.mxu0 %v114
    %133 = vmatpush.msra.mxu0 %v113
    %134 = vmatpush.msra.mxu0 %v112
    %135 = vmatpush.msra.mxu0 %v111
    %136 = vmatpush.msra.mxu0 %v110
    %137 = vmatpush.msra.mxu0 %v109
    %138 = vmatmul.f32.gmra.mxu0 %v120
    %v139 = vpop.f32.mrf.mxu0
    %v140 = vadd.f32 %v118, %v139
    %141 = vdwg.mxu0
    %142 = vst [vmem:[#allocation7] sm:$0xff] %v140
    // Predicated region
    $region18: #{fused_mlp_forward.1} parent=1 // pred_check
      _
    $region19: #{fused_mlp_forward.1} parent=1 // pred_check_branch
      %144 = sbr.rel (0) target = $region21
    $region20: #{fused_mlp_forward.1} parent=1 // pred_region
      %146 = vsyncadd [#allocation4], 0
      %s148 = sshll.u32 [#allocation7], 4
      %s149 = int_to_ptr.vmem [resolvable:$true] %s148
      %s150 = sshll.u32 %s2, 4
      %s151 = int_to_ptr.hbm [resolvable:$true] %s150
      %153 = dma.vmem_to_hbm [thread:$0]  %s149, 128, %s151, [#allocation4]
    $region21: #{fused_mlp_forward.1} parent=1 // pred_fallthru
      _
    // Predicated region
    $region22: #{fused_mlp_forward.1} parent=1 // pred_check
      _
    $region23: #{fused_mlp_forward.1} parent=1 // pred_check_branch
      %155 = sbr.rel (0) target = $region25
    $region24: #{fused_mlp_forward.1} parent=1 // pred_region
      %157 = dma.done [#allocation4], 128
    $region25: #{fused_mlp_forward.1} parent=1 // pred_fallthru
      _
    %158 = vsyncpa [#allocation3], 1
    %159 = vsyncpa [#allocation6], 1
    %160 = vsyncpa [#allocation4], 1

</llo_original>
